<compile_context>
chip_gen: v7x
topology: tpu7x:2x2x1
jax: 0.10.0
libtpu: 0.0.40
codegen_flags: <defaults>
</compile_context>

<pallas_src>
import functools

import jax
import jax.numpy as jnp
import numpy as np
from jax.experimental import pallas as pl
from jax.experimental.pallas import tpu as pltpu

EPS = 1e-5
LANE = 128      # TPU lane width; feature dims are zero-padded to a multiple of this
DEF_TM = 128    # node-row tile (rows of A_hat streamed per grid step)


def _round_up(x, m):
    return ((x + m - 1) // m) * m


def _pad2d(a, rows, cols):
    return jnp.pad(a, ((0, rows - a.shape[0]), (0, cols - a.shape[1])))


def _vmem_budget(byte_terms):
    # double-buffered blocks + headroom; floor keeps it valid on every TPU gen
    return int(max(2 * sum(byte_terms) + (8 << 20), 32 << 20))


# ------------------------------------------------------------------ kernels ----

def _bn_act_project_kernel(h_ref, scale_ref, shift_ref, alpha_ref, w_ref, out_ref):
    """Per row-tile: y = PReLU(scale*h + shift) in f32; out = bf16(y) @ W_bf16 (f32 acc)."""
    y = h_ref[...] * scale_ref[...] + shift_ref[...]
    alpha = alpha_ref[0]                                   # SMEM scalar
    y = jnp.where(y >= 0.0, y, alpha * y)
    out_ref[...] = jnp.dot(
        y.astype(jnp.bfloat16), w_ref[...],
        preferred_element_type=jnp.float32).astype(out_ref.dtype)


def _bn_act_kernel(h_ref, scale_ref, shift_ref, alpha_ref, out_ref):
    """Per row-tile: out = PReLU(scale*h + shift) (final layer, no projection)."""
    y = h_ref[...] * scale_ref[...] + shift_ref[...]
    alpha = alpha_ref[0]
    out_ref[...] = jnp.where(y >= 0.0, y, alpha * y)


def _aggregate_kernel(a_ref, xw_ref, b_ref, h_ref, stats_ref, *, tm, n_real):
    """Per row-tile: h = A_tile_bf16 @ XW_bf16 + b (f32 acc) plus per-tile partial
    BatchNorm statistics (sum / sum-of-squares over valid rows) -> phase 1 of BN."""
    i = pl.program_id(0)
    h = jnp.dot(a_ref[...], xw_ref[...],
                preferred_element_type=jnp.float32) + b_ref[...]
    h_ref[...] = h
    # mask rows that are only zero-padding of the node axis
    row = jax.lax.broadcasted_iota(jnp.int32, (tm, 1), 0) + i * tm
    valid = (row < n_real).astype(jnp.float32)
    hm = h * valid
    s = jnp.sum(hm, axis=0, keepdims=True)                 # [1, F]
    ss = jnp.sum(hm * hm, axis=0, keepdims=True)           # [1, F]
    pad = jnp.zeros((6, h.shape[1]), jnp.float32)
    stats_ref[...] = jnp.concatenate([s, ss, pad], axis=0)[None]   # [1, 8, F]


# ------------------------------------------------------------ pallas wrappers ----

def _call_bn_act_project(h, scale, shift, alpha, w, tm):
    n_pad, fp = h.shape
    f2p = w.shape[1]
    budget = _vmem_budget([tm * fp * 4, 8 * fp * 4, 8 * fp * 4,
                           fp * f2p * 2, tm * f2p * 2])
    return pl.pallas_call(
        _bn_act_project_kernel,
        out_shape=jax.ShapeDtypeStruct((n_pad, f2p), jnp.bfloat16),
        grid=(n_pad // tm,),
        in_specs=[
            pl.BlockSpec((tm, fp), lambda i: (i, 0)),            # h row tiles
            pl.BlockSpec((1, fp), lambda i: (0, 0)),             # BN scale (resident)
            pl.BlockSpec((1, fp), lambda i: (0, 0)),             # BN shift (resident)
            pl.BlockSpec(memory_space=pltpu.MemorySpace.SMEM),   # PReLU alpha scalar
            pl.BlockSpec((fp, f2p), lambda i: (0, 0)),           # next-layer W (resident)
        ],
        out_specs=pl.BlockSpec((tm, f2p), lambda i: (i, 0)),
        compiler_params=pltpu.CompilerParams(
            dimension_semantics=("parallel",),
            vmem_limit_bytes=budget),
    )(h, scale, shift, alpha, w)


def _call_bn_act(h, scale, shift, alpha, tm):
    n_pad, fp = h.shape
    budget = _vmem_budget([tm * fp * 4, 8 * fp * 4, 8 * fp * 4, tm * fp * 4])
    return pl.pallas_call(
        _bn_act_kernel,
        out_shape=jax.ShapeDtypeStruct((n_pad, fp), jnp.float32),
        grid=(n_pad // tm,),
        in_specs=[
            pl.BlockSpec((tm, fp), lambda i: (i, 0)),
            pl.BlockSpec((1, fp), lambda i: (0, 0)),
            pl.BlockSpec((1, fp), lambda i: (0, 0)),
            pl.BlockSpec(memory_space=pltpu.MemorySpace.SMEM),
        ],
        out_specs=pl.BlockSpec((tm, fp), lambda i: (i, 0)),
        compiler_params=pltpu.CompilerParams(
            dimension_semantics=("parallel",),
            vmem_limit_bytes=budget),
    )(h, scale, shift, alpha)


def _call_aggregate(a_bf16, xw_bf16, bias, tm, n_real):
    n_pad = a_bf16.shape[0]
    fp = xw_bf16.shape[1]
    num_tiles = n_pad // tm
    budget = _vmem_budget([tm * n_pad * 2, n_pad * fp * 2, 8 * fp * 4,
                           tm * fp * 4, 8 * fp * 4])
    kernel = functools.partial(_aggregate_kernel, tm=tm, n_real=n_real)
    return pl.pallas_call(
        kernel,
        out_shape=(jax.ShapeDtypeStruct((n_pad, fp), jnp.float32),
                   jax.ShapeDtypeStruct((num_tiles, 8, fp), jnp.float32)),
        grid=(num_tiles,),
        in_specs=[
            pl.BlockSpec((tm, n_pad), lambda i: (i, 0)),   # stream A_hat row tiles
            pl.BlockSpec((n_pad, fp), lambda i: (0, 0)),   # XW stays resident in VMEM
            pl.BlockSpec((1, fp), lambda i: (0, 0)),       # bias
        ],
        out_specs=(pl.BlockSpec((tm, fp), lambda i: (i, 0)),
                   pl.BlockSpec((1, 8, fp), lambda i: (i, 0, 0))),
        compiler_params=pltpu.CompilerParams(
            dimension_semantics=("parallel",),
            vmem_limit_bytes=budget),
    )(a_bf16, xw_bf16, bias)


# ------------------------------------------------------------------ forward ----

def encoder_forward(x, a_hat, params, *, tm=DEF_TM):
    """Two GCN layers with BatchNorm1d (training/batch stats) + PReLU."""
    n_real, in_dim = x.shape
    hidden = params["w1"].shape[1]
    latent = params["w2"].shape[1]

    n_pad = _round_up(max(n_real, tm), tm)
    in_p = _round_up(in_dim, LANE)
    hid_p = _round_up(hidden, LANE)
    lat_p = _round_up(latent, LANE)

    f32 = jnp.float32
    x_pad = _pad2d(x.astype(f32), n_pad, in_p)
    a_pad = _pad2d(a_hat.astype(f32), n_pad, n_pad).astype(jnp.bfloat16)

    w1 = _pad2d(params["w1"], in_p, hid_p).astype(jnp.bfloat16)
    w2 = _pad2d(params["w2"], hid_p, lat_p).astype(jnp.bfloat16)
    b1 = _pad2d(params["b1"], 1, hid_p)
    b2 = _pad2d(params["b2"], 1, lat_p)
    g1 = _pad2d(params["g1"], 1, hid_p)
    g2 = _pad2d(params["g2"], 1, lat_p)
    be1 = _pad2d(params["be1"], 1, hid_p)
    be2 = _pad2d(params["be2"], 1, lat_p)
    a1 = params["a1"].reshape((1,)).astype(f32)
    a2 = params["a2"].reshape((1,)).astype(f32)

    # identity "pre-activation" used for the very first X @ W1 projection
    one_in = jnp.ones((1, in_p), f32)
    zero_in = jnp.zeros((1, in_p), f32)
    ident_alpha = jnp.ones((1,), f32)

    def bn_affine(stats, gamma, beta):
        # phase 2 of the BN reduction: fold mean/var into per-feature scale/shift
        s = jnp.sum(stats[:, 0, :], axis=0)
        ss = jnp.sum(stats[:, 1, :], axis=0)
        mean = s / n_real
        var = jnp.maximum(ss / n_real - mean * mean, 0.0)     # biased var (torch BN)
        inv = jax.lax.rsqrt(var + EPS)
        scale = gamma * inv[None, :]
        shift = beta - mean[None, :] * scale
        return scale, shift

    # ---- layer 1 ----
    xw1 = _call_bn_act_project(x_pad, one_in, zero_in, ident_alpha, w1, tm)  # X @ W1
    h1, st1 = _call_aggregate(a_pad, xw1, b1, tm, n_real)                    # A_hat @ XW1 + b1
    sc1, sh1 = bn_affine(st1, g1, be1)

    # ---- layer 2 (BN1 + PReLU1 fused into the W2 projection) ----
    xw2 = _call_bn_act_project(h1, sc1, sh1, a1, w2, tm)                     # act(BN(h1)) @ W2
    h2, st2 = _call_aggregate(a_pad, xw2, b2, tm, n_real)                    # A_hat @ XW2 + b2
    sc2, sh2 = bn_affine(st2, g2, be2)

    out = _call_bn_act(h2, sc2, sh2, a2, tm)                                 # act(BN(h2))
    return out[:n_real, :latent]


# ------------------------------------------------------------------- glue ----

def build_normalized_adjacency(edge_index, num_nodes):
    """Dense GCN-normalized adjacency: A_hat = D^-1/2 (A + I) D^-1/2."""
    src, dst = edge_index
    a = jnp.zeros((num_nodes, num_nodes), jnp.float32)
    a = a.at[dst, src].set(1.0)
    a = a.at[jnp.arange(num_nodes), jnp.arange(num_nodes)].set(1.0)
    deg = jnp.sum(a, axis=1)
    d_inv_sqrt = jnp.where(deg > 0, 1.0 / jnp.sqrt(deg), 0.0)
    return d_inv_sqrt[:, None] * a * d_inv_sqrt[None, :]


def init_params(key, input_dim, hidden_dim, latent_dim):
    k1, k2 = jax.random.split(key)

    def glorot(k, fan_in, fan_out):
        lim = np.sqrt(6.0 / (fan_in + fan_out))
        return jax.random.uniform(k, (fan_in, fan_out), jnp.float32, -lim, lim)

    return {
        "w1": glorot(k1, input_dim, hidden_dim),
        "b1": jnp.zeros((1, hidden_dim), jnp.float32),
        "g1": jnp.ones((1, hidden_dim), jnp.float32),
        "be1": jnp.zeros((1, hidden_dim), jnp.float32),
        "a1": jnp.full((1,), 0.25, jnp.float32),
        "w2": glorot(k2, hidden_dim, latent_dim),
        "b2": jnp.zeros((1, latent_dim), jnp.float32),
        "g2": jnp.ones((1, latent_dim), jnp.float32),
        "be2": jnp.zeros((1, latent_dim), jnp.float32),
        "a2": jnp.full((1,), 0.25, jnp.float32),
    }


def reference_forward(x, a_hat, p):
    """Pure-JAX reference mirroring the kernel's bf16 MXU-input casts (f32 math)."""
    f32 = jnp.float32
    bf = lambda v: v.astype(jnp.bfloat16).astype(f32)
    a = bf(a_hat)
    n = x.shape[0]

    def bn_prelu(h, g, be, alpha):
        mean = jnp.sum(h, axis=0) / n
        var = jnp.maximum(jnp.sum(h * h, axis=0) / n - mean * mean, 0.0)
        inv = jax.lax.rsqrt(var + EPS)
        scale = g * inv[None, :]
        shift = be - mean[None, :] * scale
        y = h * scale + shift
        return jnp.where(y >= 0, y, alpha * y)

    xw1 = bf(jnp.dot(bf(x), bf(p["w1"])))
    h1 = jnp.dot(a, xw1) + p["b1"]
    y1 = bn_prelu(h1, p["g1"], p["be1"], p["a1"][0])

    xw2 = bf(jnp.dot(bf(y1), bf(p["w2"])))
    h2 = jnp.dot(a, xw2) + p["b2"]
    return bn_prelu(h2, p["g2"], p["be2"], p["a2"][0])


if __name__ == "__main__":
    key = jax.random.PRNGKey(0)
    k_x, k_e, k_p = jax.random.split(key, 3)

    num_nodes = 200          # deliberately not a multiple of the 128-row tile
    input_dim, hidden_dim, latent_dim = 16, 32, 16
    num_edges = 400

    x = jax.random.normal(k_x, (num_nodes, input_dim), jnp.float32)
    e = jax.random.randint(k_e, (2, num_edges), 0, num_nodes)
    edge_index = jnp.concatenate([e, e[::-1]], axis=1)       # undirected graph

    a_hat = build_normalized_adjacency(edge_index, num_nodes)
    params = init_params(k_p, input_dim, hidden_dim, latent_dim)

    out = encoder_forward(x, a_hat, params)
    out = jax.block_until_ready(out)

    ref = reference_forward(x, a_hat, params)
    np.testing.assert_allclose(np.asarray(out), np.asarray(ref),
                               rtol=2e-3, atol=2e-3)

    print("KERNEL_OK")
</pallas_src>

<mosaic_0001>
module attributes {stable_mosaic.version = 11 : i64} {
  func.func @_bn_act_project_kernel(%arg0: i32, %arg1: memref<128x128xf32, #tpu.memory_space<vmem>>, %arg2: memref<1x128xf32, #tpu.memory_space<vmem>>, %arg3: memref<1x128xf32, #tpu.memory_space<vmem>>, %arg4: memref<1xf32, #tpu.memory_space<smem>>, %arg5: memref<128x128xbf16, #tpu.memory_space<vmem>>, %arg6: memref<128x128xbf16, #tpu.memory_space<vmem>>) attributes {dimension_semantics = [#tpu.dimension_semantics<parallel>], iteration_bounds = array<i64: 2>, scalar_prefetch = 0 : i64, scratch_operands = 0 : i64, tpu.core_type = #tpu.core_type<tc>, window_params = [{transform_indices = @transform_0, window_bounds = array<i64: 128, 128>}, {pipeline_mode = #tpu.pipeline_mode<synchronous>, transform_indices = @transform_1, window_bounds = array<i64: 1, 128>}, {pipeline_mode = #tpu.pipeline_mode<synchronous>, transform_indices = @transform_2, window_bounds = array<i64: 1, 128>}, {transform_indices = @transform_3, window_bounds = array<i64: 1>}, {pipeline_mode = #tpu.pipeline_mode<synchronous>, transform_indices = @transform_4, window_bounds = array<i64: 128, 128>}, {transform_indices = @transform_5, window_bounds = array<i64: 128, 128>}]} {
    %c0 = arith.constant 0 : index
    %c0_0 = arith.constant 0 : index
    %0 = vector.load %arg1[%c0, %c0_0] : memref<128x128xf32, #tpu.memory_space<vmem>>, vector<128x128xf32>
    %c0_1 = arith.constant 0 : index
    %c0_2 = arith.constant 0 : index
    %1 = vector.load %arg2[%c0_1, %c0_2] : memref<1x128xf32, #tpu.memory_space<vmem>>, vector<1x128xf32>
    %2 = vector.broadcast %1 : vector<1x128xf32> to vector<128x128xf32>
    %3 = arith.mulf %0, %2 : vector<128x128xf32>
    %c0_3 = arith.constant 0 : index
    %c0_4 = arith.constant 0 : index
    %4 = vector.load %arg3[%c0_3, %c0_4] : memref<1x128xf32, #tpu.memory_space<vmem>>, vector<1x128xf32>
    %5 = vector.broadcast %4 : vector<1x128xf32> to vector<128x128xf32>
    %6 = arith.addf %3, %5 : vector<128x128xf32>
    %c0_5 = arith.constant 0 : index
    %7 = memref.load %arg4[%c0_5] : memref<1xf32, #tpu.memory_space<smem>>
    %cst = arith.constant 0.000000e+00 : f32
    %8 = vector.broadcast %cst : f32 to vector<128x128xf32>
    %9 = arith.cmpf oge, %6, %8 : vector<128x128xf32>
    %10 = vector.broadcast %7 : f32 to vector<128x128xf32>
    %11 = arith.mulf %10, %6 : vector<128x128xf32>
    %12 = arith.select %9, %6, %11 : vector<128x128xi1>, vector<128x128xf32>
    %13 = arith.truncf %12 : vector<128x128xf32> to vector<128x128xbf16>
    %c0_6 = arith.constant 0 : index
    %c0_7 = arith.constant 0 : index
    %14 = vector.load %arg5[%c0_6, %c0_7] : memref<128x128xbf16, #tpu.memory_space<vmem>>, vector<128x128xbf16>
    %cst_8 = arith.constant dense<0.000000e+00> : vector<128x128xf32>
    %15 = tpu.matmul %13, %14, %cst_8 {dimension_numbers = #tpu.dot_dimension_numbers<[1], [0], [0], [1], [0, 0, 1, 1], [], []>} : vector<128x128xbf16>, vector<128x128xbf16>, vector<128x128xf32> -> vector<128x128xf32>
    %16 = arith.truncf %15 : vector<128x128xf32> to vector<128x128xbf16>
    %c0_9 = arith.constant 0 : index
    %c0_10 = arith.constant 0 : index
    %17 = vector.load %arg6[%c0_9, %c0_10] : memref<128x128xbf16, #tpu.memory_space<vmem>>, vector<128x128xbf16>
    tpu.vector_store %arg6[%c0_9, %c0_10], %16 {strides = array<i32>} : memref<128x128xbf16, #tpu.memory_space<vmem>>, vector<128x128xbf16>,
    return
  }
  func.func @transform_0(%arg0: i32) -> (i32, i32) {
    %c0_i32 = arith.constant 0 : i32
    %c0_i32_0 = arith.constant 0 : i32
    return %arg0, %c0_i32 : i32, i32
  }
  func.func @transform_1(%arg0: i32) -> (i32, i32) {
    %c0_i32 = arith.constant 0 : i32
    %c0_i32_0 = arith.constant 0 : i32
    %c0_i32_1 = arith.constant 0 : i32
    return %c0_i32, %c0_i32_0 : i32, i32
  }
  func.func @transform_2(%arg0: i32) -> (i32, i32) {
    %c0_i32 = arith.constant 0 : i32
    %c0_i32_0 = arith.constant 0 : i32
    %c0_i32_1 = arith.constant 0 : i32
    return %c0_i32, %c0_i32_0 : i32, i32
  }
  func.func @transform_3(%arg0: i32) -> i32 {
    %c0_i32 = arith.constant 0 : i32
    %c0_i32_0 = arith.constant 0 : i32
    return %c0_i32 : i32
  }
  func.func @transform_4(%arg0: i32) -> (i32, i32) {
    %c0_i32 = arith.constant 0 : i32
    %c0_i32_0 = arith.constant 0 : i32
    %c0_i32_1 = arith.constant 0 : i32
    return %c0_i32, %c0_i32_0 : i32, i32
  }
  func.func @transform_5(%arg0: i32) -> (i32, i32) {
    %c0_i32 = arith.constant 0 : i32
    %c0_i32_0 = arith.constant 0 : i32
    return %arg0, %c0_i32 : i32, i32
  }
}

</mosaic_0001>

<llo_original>
// kernel: tpu_custom_call.1
$region0: #{tpu_custom_call.1}
  #allocation0 [shape = 'u32[]', space=smem, size = 0x4, offset = 0x4, fixed_abs, tag = 'smem constant byte address 0x4 - core index']
  #allocation1 [shape = 'u32[144,128]{1,0:T(1,128)}', space=vmem, size = 0x12000, scoped, tag = 'internal scratch']
  #allocation2 [shape = 'f32[1]{0:T(128)S(6)}', space=smem, size = 0x200, scoped, tag = 'scoped memory for tpu_custom_call.1']
  %s0 = inlined_call_operand.hbm [shape: f32[256,128], index: 0, kind: input, shape index: {}]
  %s1 = inlined_call_operand.vmem [shape: f32[1,128], index: 1, kind: input, shape index: {}]
  %s2 = inlined_call_operand.vmem [shape: f32[1,128], index: 2, kind: input, shape index: {}]
  %s3 = inlined_call_operand.<no memory space> [shape: f32[1], index: 3, kind: input, shape index: {}]
  %s4 = inlined_call_operand.hbm [shape: bf16[128,128], index: 4, kind: input, shape index: {}]
  %s5 = inlined_call_operand.hbm [shape: bf16[256,128], index: 5, kind: output, shape index: {}]
  %s6 = sld [smem:[#allocation0]]
  $region61: #{tpu_custom_call.1} parent=0
    _
  %s8 = ssub.s32 1, %s6
  %s9 = scalar_select 0, %s8, %s6
  %10 = sst [smem:[#allocation2]] %s3
  $region1: #{tpu_custom_call.1} parent=0
    #allocation3 [shape = 'u8[131072]{0}', space=vmem, size = 0x20000, scoped, tag = 'input window, operand 0']
    #allocation4 [shape = 's32[2]{0}', space=sflag, size = 0x8, scoped, tag = 'scoped memory for tpu_custom_call.1']
    #allocation5 [shape = 's32[2]{0}', space=sflag, size = 0x8, scoped, tag = 'scoped memory for tpu_custom_call.1']
    #allocation6 [shape = 'u8[32768]{0}', space=vmem, size = 0x8000, scoped, tag = 'input window, operand 4, single buffered']
    #allocation7 [shape = 's32[1]{0}', space=sflag, size = 0x4, scoped, tag = 'scoped memory for tpu_custom_call.1']
    #allocation8 [shape = 'u8[65536]{0}', space=vmem, size = 0x10000, scoped, tag = 'output window, operand 0']
    %11 = vsyncpa [#allocation4], 0
    %s12 = scalar_lea.sflag [#allocation4], 1
    %13 = vsyncpa %s12, 0
    %14 = vsyncpa [#allocation7], 0
    %15 = vsyncpa [#allocation5], 0
    %s16 = scalar_lea.sflag [#allocation5], 1
    %17 = vsyncpa %s16, 0
    loop: start=0, step=1, limit=4
    $region2: #{tpu_custom_call.1} parent=1 // loop_pre_header
      _
    $region3: #{tpu_custom_call.1} parent=1 // loop_header
      %s19 = sphi 0, %s23
      %p20 = scmp.ge.s32.totalorder %s19, 4
      %s29 = sphi 0, %s31
      %s32 = sphi 0, %s29
      %s33 = sphi 0, %s32
      %s49 = sphi 0, %s33
      %s53 = sphi 0, %s53
      %s55 = sphi 0, %s53
      %s56 = sphi 0, %s55
      %s70 = sphi 0, %s56
      %s74 = sphi 0, %s74
      %s76 = sphi 0, %s74
      %s77 = sphi 0, %s76
      %s91 = sphi 0, %s77
      %s95 = sphi 0, %s95
      %s97 = sphi 0, %s95
      %s98 = sphi 0, %s97
      %s112 = sphi 0, %s98
      %s116 = sphi 0, %s116
      %s118 = sphi 0, %s116
      %s119 = sphi 0, %s118
      %s133 = sphi 0, %s119
      %s139 = sphi 0, %s141
      %s142 = sphi 0, %s139
      %s143 = sphi 0, %s142
      %s159 = sphi 0, %s143
    $region4: #{tpu_custom_call.1} parent=1 // loop_header_branch
      %22 = sbr.rel (%p20) target = $region8
    $region5: #{tpu_custom_call.1} parent=1 // loop_body
      %s24 = ssub.s32 %s19, 1
      %s25 = ssub.s32 %s19, 2
      %s26 = sadd.s32 %s19, 1
      %s27 = ssub.s32 %s19, %s26
      %p28 = scmp.eq.s32.totalorder %s27, 0
      %s30 = sadd.s32 %s29, 1
      %s31 = scalar_select %p28, %s29, %s30
      %p34 = pneg %p28
      %p35 = scmp.eq.s32.totalorder %s19, 1
      %p36 = por %p34, %p35
      %p37 = scmp.ne.s32.totalorder %s29, %s32
      %p38 = scmp.eq.s32.totalorder %s19, 0
      %p39 = por %p37, %p38
      %p40 = scmp.ne.s32.totalorder %s29, %s32
      %p41 = scmp.eq.s32.totalorder %s24, 1
      %p42 = por %p40, %p41
      %p43 = scmp.ne.s32.totalorder %s32, %s33
      %p44 = scmp.eq.s32.totalorder %s24, 0
      %p45 = por %p43, %p44
      %p46 = scmp.ne.s32.totalorder %s32, %s33
      %p47 = scmp.eq.s32.totalorder %s25, 1
      %p48 = por %p46, %p47
      %p50 = scmp.ne.s32.totalorder %s33, %s49
      %p51 = scmp.eq.s32.totalorder %s25, 0
      %p52 = por %p50, %p51
      %s54 = sadd.s32 %s53, 1
      %p57 = scmp.eq.s32.totalorder %s19, 1
      %p58 = scmp.ne.s32.totalorder %s53, %s55
      %p59 = scmp.eq.s32.totalorder %s19, 0
      %p60 = por %p58, %p59
      %p61 = scmp.ne.s32.totalorder %s53, %s55
      %p62 = scmp.eq.s32.totalorder %s24, 1
      %p63 = por %p61, %p62
      %p64 = scmp.ne.s32.totalorder %s55, %s56
      %p65 = scmp.eq.s32.totalorder %s24, 0
      %p66 = por %p64, %p65
      %p67 = scmp.ne.s32.totalorder %s55, %s56
      %p68 = scmp.eq.s32.totalorder %s25, 1
      %p69 = por %p67, %p68
      %p71 = scmp.ne.s32.totalorder %s56, %s70
      %p72 = scmp.eq.s32.totalorder %s25, 0
      %p73 = por %p71, %p72
      %s75 = sadd.s32 %s74, 1
      %p78 = scmp.eq.s32.totalorder %s19, 1
      %p79 = scmp.ne.s32.totalorder %s74, %s76
      %p80 = scmp.eq.s32.totalorder %s19, 0
      %p81 = por %p79, %p80
      %p82 = scmp.ne.s32.totalorder %s74, %s76
      %p83 = scmp.eq.s32.totalorder %s24, 1
      %p84 = por %p82, %p83
      %p85 = scmp.ne.s32.totalorder %s76, %s77
      %p86 = scmp.eq.s32.totalorder %s24, 0
      %p87 = por %p85, %p86
      %p88 = scmp.ne.s32.totalorder %s76, %s77
      %p89 = scmp.eq.s32.totalorder %s25, 1
      %p90 = por %p88, %p89
      %p92 = scmp.ne.s32.totalorder %s77, %s91
      %p93 = scmp.eq.s32.totalorder %s25, 0
      %p94 = por %p92, %p93
      %s96 = sadd.s32 %s95, 1
      %p99 = scmp.eq.s32.totalorder %s19, 1
      %p100 = scmp.ne.s32.totalorder %s95, %s97
      %p101 = scmp.eq.s32.totalorder %s19, 0
      %p102 = por %p100, %p101
      %p103 = scmp.ne.s32.totalorder %s95, %s97
      %p104 = scmp.eq.s32.totalorder %s24, 1
      %p105 = por %p103, %p104
      %p106 = scmp.ne.s32.totalorder %s97, %s98
      %p107 = scmp.eq.s32.totalorder %s24, 0
      %p108 = por %p106, %p107
      %p109 = scmp.ne.s32.totalorder %s97, %s98
      %p110 = scmp.eq.s32.totalorder %s25, 1
      %p111 = por %p109, %p110
      %p113 = scmp.ne.s32.totalorder %s98, %s112
      %p114 = scmp.eq.s32.totalorder %s25, 0
      %p115 = por %p113, %p114
      %s117 = sadd.s32 %s116, 1
      %p120 = scmp.eq.s32.totalorder %s19, 1
      %p121 = scmp.ne.s32.totalorder %s116, %s118
      %p122 = scmp.eq.s32.totalorder %s19, 0
      %p123 = por %p121, %p122
      %p124 = scmp.ne.s32.totalorder %s116, %s118
      %p125 = scmp.eq.s32.totalorder %s24, 1
      %p126 = por %p124, %p125
      %p127 = scmp.ne.s32.totalorder %s118, %s119
      %p128 = scmp.eq.s32.totalorder %s24, 0
      %p129 = por %p127, %p128
      %p130 = scmp.ne.s32.totalorder %s118, %s119
      %p131 = scmp.eq.s32.totalorder %s25, 1
      %p132 = por %p130, %p131
      %p134 = scmp.ne.s32.totalorder %s119, %s133
      %p135 = scmp.eq.s32.totalorder %s25, 0
      %p136 = por %p134, %p135
      %s137 = ssub.s32 %s19, %s26
      %p138 = scmp.eq.s32.totalorder %s137, 0
      %s140 = sadd.s32 %s139, 1
      %s141 = scalar_select %p138, %s139, %s140
      %p144 = pneg %p138
      %p145 = scmp.eq.s32.totalorder %s19, 1
      %p146 = por %p144, %p145
      %p147 = scmp.ne.s32.totalorder %s139, %s142
      %p148 = scmp.eq.s32.totalorder %s19, 0
      %p149 = por %p147, %p148
      %p150 = scmp.ne.s32.totalorder %s139, %s142
      %p151 = scmp.eq.s32.totalorder %s24, 1
      %p152 = por %p150, %p151
      %p153 = scmp.ne.s32.totalorder %s142, %s143
      %p154 = scmp.eq.s32.totalorder %s24, 0
      %p155 = por %p153, %p154
      %p156 = scmp.ne.s32.totalorder %s142, %s143
      %p157 = scmp.eq.s32.totalorder %s25, 1
      %p158 = por %p156, %p157
      %p160 = scmp.ne.s32.totalorder %s143, %s159
      %p161 = scmp.eq.s32.totalorder %s25, 0
      %p162 = por %p160, %p161
      %p163 = scmp.le.s32.totalorder 1, %s19
      %p164 = scmp.lt.s32.totalorder %s19, 3
      %p165 = pnand %p163, %p164
      %p166 = pneg %p165
      // Predicated region
      $region9: #{tpu_custom_call.1} parent=5 // pred_check
        _
      $region10: #{tpu_custom_call.1} parent=5 // pred_check_branch
        %168 = sbr.rel (%p165) target = $region12
      $region11: #{tpu_custom_call.1} parent=5 // pred_region
        %s169 = ssub.s32 %s19, 1
        // Predicated region
        $region13: #{tpu_custom_call.1} parent=11 // pred_check
          %p170 = pneg %p66
        $region14: #{tpu_custom_call.1} parent=11 // pred_check_branch
          %172 = sbr.rel (%p170) target = $region16
        $region15: #{tpu_custom_call.1} parent=11 // pred_region
          _
        $region16: #{tpu_custom_call.1} parent=11 // pred_fallthru
          _
        // Predicated region
        $region17: #{tpu_custom_call.1} parent=11 // pred_check
          %p173 = pneg %p87
        $region18: #{tpu_custom_call.1} parent=11 // pred_check_branch
          %175 = sbr.rel (%p173) target = $region20
        $region19: #{tpu_custom_call.1} parent=11 // pred_region
          _
        $region20: #{tpu_custom_call.1} parent=11 // pred_fallthru
          _
        // Predicated region
        $region21: #{tpu_custom_call.1} parent=11 // pred_check
          %p176 = pneg %p108
        $region22: #{tpu_custom_call.1} parent=11 // pred_check_branch
          %178 = sbr.rel (%p176) target = $region24
        $region23: #{tpu_custom_call.1} parent=11 // pred_region
          _
        $region24: #{tpu_custom_call.1} parent=11 // pred_fallthru
          _
        // Predicated region
        $region25: #{tpu_custom_call.1} parent=11 // pred_check
          %p179 = pneg %p129
        $region26: #{tpu_custom_call.1} parent=11 // pred_check_branch
          %181 = sbr.rel (%p179) target = $region28
        $region27: #{tpu_custom_call.1} parent=11 // pred_region
          %s183 = ssub.s32 1024, 1024
          %184 = vsyncadd [#allocation7], %s183
          %s185 = sshll.u32 [#allocation6], 4
          %s186 = int_to_ptr.vmem [resolvable:$true] %s185
          %191 = dma.hbm_to_vmem [thread:$0]  %s4, 1024, %s186, [#allocation7], 64, 64, 4
        $region28: #{tpu_custom_call.1} parent=11 // pred_fallthru
          _
      $region12: #{tpu_custom_call.1} parent=5 // pred_fallthru
        _
      %p192 = scmp.lt.s32.totalorder %s19, 2
      // Predicated region
      $region29: #{tpu_custom_call.1} parent=5 // pred_check
        %p193 = pneg %p192
      $region30: #{tpu_custom_call.1} parent=5 // pred_check_branch
        %195 = sbr.rel (%p193) target = $region32
      $region31: #{tpu_custom_call.1} parent=5 // pred_region
        // Predicated region
        $region33: #{tpu_custom_call.1} parent=31 // pred_check
          %p196 = pneg %p39
        $region34: #{tpu_custom_call.1} parent=31 // pred_check_branch
          %198 = sbr.rel (%p196) target = $region36
        $region35: #{tpu_custom_call.1} parent=31 // pred_region
          %s199 = sand.u32 %s29, 1
          %s200 = scalar_lea.sflag [#allocation4], %s199
          %s201 = sand.u32 %s29, 1
          %s202 = smul.addr %s201, 128
          %s203 = scalar_lea.vmem [#allocation3], %s202
          %s204 = smul.u32 16, %s19
          %s206 = ssub.s32 2048, 2048
          %207 = vsyncadd %s200, %s206
          %s208 = smul.addr %s204, 128
          %s209 = scalar_lea.hbm %s0, %s208
          %s210 = sshll.u32 %s203, 4
          %s211 = int_to_ptr.vmem [resolvable:$true] %s210
          %216 = dma.hbm_to_vmem [thread:$0]  %s209, 2048, %s211, %s200, 128, 128, 8
        $region36: #{tpu_custom_call.1} parent=31 // pred_fallthru
          _
      $region32: #{tpu_custom_call.1} parent=5 // pred_fallthru
        _
      %p217 = scmp.le.s32.totalorder 1, %s19
      %p218 = scmp.lt.s32.totalorder %s19, 3
      %p219 = pnand %p217, %p218
      %p220 = pneg %p219
      // Predicated region
      $region37: #{tpu_custom_call.1} parent=5 // pred_check
        _
      $region38: #{tpu_custom_call.1} parent=5 // pred_check_branch
        %222 = sbr.rel (%p219) target = $region40
      $region39: #{tpu_custom_call.1} parent=5 // pred_region
        %s223 = ssub.s32 %s19, 1
        %s224 = sand.u32 %s32, 1
        %s225 = scalar_lea.sflag [#allocation4], %s224
        %s226 = sand.u32 %s32, 1
        %s227 = smul.addr %s226, 128
        %s228 = scalar_lea.vmem [#allocation3], %s227
        // Predicated region
        $region41: #{tpu_custom_call.1} parent=39 // pred_check
          %p229 = pneg %p45
        $region42: #{tpu_custom_call.1} parent=39 // pred_check_branch
          %231 = sbr.rel (%p229) target = $region44
        $region43: #{tpu_custom_call.1} parent=39 // pred_region
          %232 = dma.done %s225, 2048
        $region44: #{tpu_custom_call.1} parent=39 // pred_fallthru
          _
        // Predicated region
        $region45: #{tpu_custom_call.1} parent=39 // pred_check
          %p233 = pneg %p129
        $region46: #{tpu_custom_call.1} parent=39 // pred_check_branch
          %235 = sbr.rel (%p233) target = $region48
        $region47: #{tpu_custom_call.1} parent=39 // pred_region
          %236 = dma.done [#allocation7], 1024
        $region48: #{tpu_custom_call.1} parent=39 // pred_fallthru
          _
        %s237 = sand.u32 %s32, 1
        %s238 = scalar_lea.sflag [#allocation4], %s237
        %s239 = sand.u32 %s32, 1
        %s240 = smul.addr %s239, 128
        %s241 = scalar_lea.vmem [#allocation3], %s240
        %p242 = pneg %p45
        %p243 = pneg %p42
        %p244 = pneg %p66
        %p245 = pneg %p63
        %p246 = pneg %p87
        %p247 = pneg %p84
        %p248 = pneg %p108
        %p249 = pneg %p105
        %p250 = pneg %p129
        %p251 = pneg %p126
        %p252 = pneg %p155
        %p253 = pneg %p152
        %s254 = sand.u32 %s142, 1
        %s255 = scalar_lea.sflag [#allocation5], %s254
        %s256 = sand.u32 %s142, 1
        %s257 = smul.addr %s256, 64
        %s258 = scalar_lea.vmem [#allocation8], %s257
        %s259 = smul.u32 16, %s24
        %s260 = smul.u32 16, %s24
        %v262 = vld [vmem:[%s228] sm:$0xff]
        %v263 = vld [vmem:[%s228 + $0x8] sm:$0xff]
        %v264 = vld [vmem:[%s228 + $0x10] sm:$0xff]
        %v265 = vld [vmem:[%s228 + $0x18] sm:$0xff]
        %v266 = vld [vmem:[%s228 + $0x20] sm:$0xff]
        %v267 = vld [vmem:[%s228 + $0x28] sm:$0xff]
        %v268 = vld [vmem:[%s228 + $0x30] sm:$0xff]
        %v269 = vld [vmem:[%s228 + $0x38] sm:$0xff]
        %v270 = vld [vmem:[%s228 + $0x40] sm:$0xff]
        %v271 = vld [vmem:[%s228 + $0x48] sm:$0xff]
        %v272 = vld [vmem:[%s228 + $0x50] sm:$0xff]
        %v273 = vld [vmem:[%s228 + $0x58] sm:$0xff]
        %v274 = vld [vmem:[%s228 + $0x60] sm:$0xff]
        %v275 = vld [vmem:[%s228 + $0x68] sm:$0xff]
        %v276 = vld [vmem:[%s228 + $0x70] sm:$0xff]
        %v277 = vld [vmem:[%s228 + $0x78] sm:$0xff]
        %v278 = vld [vmem:[%s1] sm:$0x1]
        %v280 = vlaneseq
        %v281 = vshrl.u32 %v280, 7
        %v282 = vsub.s32 0, %v281
        %v283 = vrot.slane %v278, %v282
        %v285 = vmul.f32 %v262, %v283
        %v286 = vmul.f32 %v263, %v283
        %v287 = vmul.f32 %v264, %v283
        %v288 = vmul.f32 %v265, %v283
        %v289 = vmul.f32 %v266, %v283
        %v290 = vmul.f32 %v267, %v283
        %v291 = vmul.f32 %v268, %v283
        %v292 = vmul.f32 %v269, %v283
        %v293 = vmul.f32 %v270, %v283
        %v294 = vmul.f32 %v271, %v283
        %v295 = vmul.f32 %v272, %v283
        %v296 = vmul.f32 %v273, %v283
        %v297 = vmul.f32 %v274, %v283
        %v298 = vmul.f32 %v275, %v283
        %v299 = vmul.f32 %v276, %v283
        %v300 = vmul.f32 %v277, %v283
        %v301 = vld [vmem:[%s2] sm:$0x1]
        %v303 = vlaneseq
        %v304 = vshrl.u32 %v303, 7
        %v305 = vsub.s32 0, %v304
        %v306 = vrot.slane %v301, %v305
        %v308 = vadd.f32 %v285, %v306
        %v309 = vadd.f32 %v286, %v306
        %v310 = vadd.f32 %v287, %v306
        %v311 = vadd.f32 %v288, %v306
        %v312 = vadd.f32 %v289, %v306
        %v313 = vadd.f32 %v290, %v306
        %v314 = vadd.f32 %v291, %v306
        %v315 = vadd.f32 %v292, %v306
        %v316 = vadd.f32 %v293, %v306
        %v317 = vadd.f32 %v294, %v306
        %v318 = vadd.f32 %v295, %v306
        %v319 = vadd.f32 %v296, %v306
        %v320 = vadd.f32 %v297, %v306
        %v321 = vadd.f32 %v298, %v306
        %v322 = vadd.f32 %v299, %v306
        %v323 = vadd.f32 %v300, %v306
        %s324 = sld [smem:[#allocation2]]
        %vm325 = vcmp.ge.f32.partialorder %v308, 0.0
        %vm326 = vcmp.ge.f32.partialorder %v309, 0.0
        %vm327 = vcmp.ge.f32.partialorder %v310, 0.0
        %vm328 = vcmp.ge.f32.partialorder %v311, 0.0
        %vm329 = vcmp.ge.f32.partialorder %v312, 0.0
        %vm330 = vcmp.ge.f32.partialorder %v313, 0.0
        %vm331 = vcmp.ge.f32.partialorder %v314, 0.0
        %vm332 = vcmp.ge.f32.partialorder %v315, 0.0
        %vm333 = vcmp.ge.f32.partialorder %v316, 0.0
        %vm334 = vcmp.ge.f32.partialorder %v317, 0.0
        %vm335 = vcmp.ge.f32.partialorder %v318, 0.0
        %vm336 = vcmp.ge.f32.partialorder %v319, 0.0
        %vm337 = vcmp.ge.f32.partialorder %v320, 0.0
        %vm338 = vcmp.ge.f32.partialorder %v321, 0.0
        %vm339 = vcmp.ge.f32.partialorder %v322, 0.0
        %vm340 = vcmp.ge.f32.partialorder %v323, 0.0
        %v341 = vstv %s324
        %v342 = vmul.f32 %v341, %v308
        %v343 = vmul.f32 %v341, %v309
        %v344 = vmul.f32 %v341, %v310
        %v345 = vmul.f32 %v341, %v311
        %v346 = vmul.f32 %v341, %v312
        %v347 = vmul.f32 %v341, %v313
        %v348 = vmul.f32 %v341, %v314
        %v349 = vmul.f32 %v341, %v315
        %v350 = vmul.f32 %v341, %v316
        %v351 = vmul.f32 %v341, %v317
        %v352 = vmul.f32 %v341, %v318
        %v353 = vmul.f32 %v341, %v319
        %v354 = vmul.f32 %v341, %v320
        %v355 = vmul.f32 %v341, %v321
        %v356 = vmul.f32 %v341, %v322
        %v357 = vmul.f32 %v341, %v323
        %v358 = vsel %vm325, %v308, %v342
        %v359 = vsel %vm326, %v309, %v343
        %v360 = vsel %vm327, %v310, %v344
        %v361 = vsel %vm328, %v311, %v345
        %v362 = vsel %vm329, %v312, %v346
        %v363 = vsel %vm330, %v313, %v347
        %v364 = vsel %vm331, %v314, %v348
        %v365 = vsel %vm332, %v315, %v349
        %v366 = vsel %vm333, %v316, %v350
        %v367 = vsel %vm334, %v317, %v351
        %v368 = vsel %vm335, %v318, %v352
        %v369 = vsel %vm336, %v319, %v353
        %v370 = vsel %vm337, %v320, %v354
        %v371 = vsel %vm338, %v321, %v355
        %v372 = vsel %vm339, %v322, %v356
        %v373 = vsel %vm340, %v323, %v357
        %v374 = vpack.c.bf16 %v359, %v358
        %v375 = vpack.c.bf16 %v361, %v360
        %v376 = vpack.c.bf16 %v363, %v362
        %v377 = vpack.c.bf16 %v365, %v364
        %v378 = vpack.c.bf16 %v367, %v366
        %v379 = vpack.c.bf16 %v369, %v368
        %v380 = vpack.c.bf16 %v371, %v370
        %v381 = vpack.c.bf16 %v373, %v372
        %v382 = vld [vmem:[#allocation6] sm:$0xf]
        %v383 = vld [vmem:[#allocation6 + $0x4] sm:$0xf]
        %v384 = vld [vmem:[#allocation6 + $0x8] sm:$0xf]
        %v385 = vld [vmem:[#allocation6 + $0xc] sm:$0xf]
        %v386 = vld [vmem:[#allocation6 + $0x10] sm:$0xf]
        %v387 = vld [vmem:[#allocation6 + $0x14] sm:$0xf]
        %v388 = vld [vmem:[#allocation6 + $0x18] sm:$0xf]
        %v389 = vld [vmem:[#allocation6 + $0x1c] sm:$0xf]
        %v390 = vld [vmem:[#allocation6 + $0x20] sm:$0xf]
        %v391 = vld [vmem:[#allocation6 + $0x24] sm:$0xf]
        %v392 = vld [vmem:[#allocation6 + $0x28] sm:$0xf]
        %v393 = vld [vmem:[#allocation6 + $0x2c] sm:$0xf]
        %v394 = vld [vmem:[#allocation6 + $0x30] sm:$0xf]
        %v395 = vld [vmem:[#allocation6 + $0x34] sm:$0xf]
        %v396 = vld [vmem:[#allocation6 + $0x38] sm:$0xf]
        %v397 = vld [vmem:[#allocation6 + $0x3c] sm:$0xf]
        %v414 = vunpack.c.l.b16 %v382
        %v415 = vunpack.c.l.b16 %v383
        %v416 = vunpack.c.l.b16 %v384
        %v417 = vunpack.c.l.b16 %v385
        %v418 = vunpack.c.l.b16 %v386
        %v419 = vunpack.c.l.b16 %v387
        %v420 = vunpack.c.l.b16 %v388
        %v421 = vunpack.c.l.b16 %v389
        %v422 = vunpack.c.l.b16 %v390
        %v423 = vunpack.c.l.b16 %v391
        %v424 = vunpack.c.l.b16 %v392
        %v425 = vunpack.c.l.b16 %v393
        %v426 = vunpack.c.l.b16 %v394
        %v427 = vunpack.c.l.b16 %v395
        %v428 = vunpack.c.l.b16 %v396
        %v429 = vunpack.c.l.b16 %v397
        %v430 = vpack.c.b16 %v415, %v414
        %v431 = vpack.c.b16 %v417, %v416
        %v432 = vpack.c.b16 %v419, %v418
        %v433 = vpack.c.b16 %v421, %v420
        %v434 = vpack.c.b16 %v423, %v422
        %v435 = vpack.c.b16 %v425, %v424
        %v436 = vpack.c.b16 %v427, %v426
        %v437 = vpack.c.b16 %v429, %v428
        %446 = vmatprep.subr.bf16.mxu0 0
        %447 = vmatpush1.bf16.msra.mxu0 %v430
        %448 = vmatprep.subr.bf16.mxu0 0
        %449 = vmatpush1.bf16.msra.mxu0 %v431
        %450 = vmatprep.subr.bf16.mxu0 0
        %451 = vmatpush1.bf16.msra.mxu0 %v432
        %452 = vmatprep.subr.bf16.mxu0 0
        %453 = vmatpush1.bf16.msra.mxu0 %v433
        %454 = vmatprep.subr.bf16.mxu0 0
        %455 = vmatpush1.bf16.msra.mxu0 %v434
        %456 = vmatprep.subr.bf16.mxu0 0
        %457 = vmatpush1.bf16.msra.mxu0 %v435
        %458 = vmatprep.subr.bf16.mxu0 0
        %459 = vmatpush1.bf16.msra.mxu0 %v436
        %460 = vmatprep.subr.bf16.mxu0 0
        %461 = vmatpush1.bf16.msra.mxu0 %v437
        %462 = vmatprep.subr.bf16.mxu0 0
        %463 = vmatpush1.bf16.msra.mxu0 0
        %464 = vmatprep.subr.bf16.mxu0 0
        %465 = vmatpush1.bf16.msra.mxu0 0
        %466 = vmatprep.subr.bf16.mxu0 0
        %467 = vmatpush1.bf16.msra.mxu0 0
        %468 = vmatprep.subr.bf16.mxu0 0
        %469 = vmatpush1.bf16.msra.mxu0 0
        %470 = vmatprep.subr.bf16.mxu0 0
        %471 = vmatpush1.bf16.msra.mxu0 0
        %472 = vmatprep.subr.bf16.mxu0 0
        %473 = vmatpush1.bf16.msra.mxu0 0
        %474 = vmatprep.subr.bf16.mxu0 0
        %475 = vmatpush1.bf16.msra.mxu0 0
        %476 = vmatprep.subr.bf16.mxu0 0
        %477 = vmatpush1.bf16.msra.mxu0 0
        %478 = vmatprep.mubr.bf16.mxu0 0
        %479 = vmatmul.mubr.bf16.gmra.mrb[0].mxu0 %v374
        %v480 = vpop.f32.mrb[0].mxu0
        %v481 = vadd.f32 0.0, %v480
        %v482 = vpop.f32.mrb[0].mxu0
        %v483 = vpop.f32.mrb[0].mxu0
        %v484 = vadd.f32 0.0, %v483
        %v485 = vpop.f32.mrb[0].mxu0
        %486 = vmatprep.mubr.bf16.mxu0 0
        %487 = vmatmul.mubr.bf16.gmra.mrb[0].mxu0 %v375
        %v488 = vpop.f32.mrb[0].mxu0
        %v489 = vadd.f32 0.0, %v488
        %v490 = vpop.f32.mrb[0].mxu0
        %v491 = vpop.f32.mrb[0].mxu0
        %v492 = vadd.f32 0.0, %v491
        %v493 = vpop.f32.mrb[0].mxu0
        %494 = vmatprep.mubr.bf16.mxu0 0
        %495 = vmatmul.mubr.bf16.gmra.mrb[0].mxu0 %v376
        %v496 = vpop.f32.mrb[0].mxu0
        %v497 = vadd.f32 0.0, %v496
        %v498 = vpop.f32.mrb[0].mxu0
        %v499 = vpop.f32.mrb[0].mxu0
        %v500 = vadd.f32 0.0, %v499
        %v501 = vpop.f32.mrb[0].mxu0
        %502 = vmatprep.mubr.bf16.mxu0 0
        %503 = vmatmul.mubr.bf16.gmra.mrb[0].mxu0 %v377
        %v504 = vpop.f32.mrb[0].mxu0
        %v505 = vadd.f32 0.0, %v504
        %v506 = vpop.f32.mrb[0].mxu0
        %v507 = vpop.f32.mrb[0].mxu0
        %v508 = vadd.f32 0.0, %v507
        %v509 = vpop.f32.mrb[0].mxu0
        %510 = vmatprep.mubr.bf16.mxu0 0
        %511 = vmatmul.mubr.bf16.gmra.mrb[0].mxu0 %v378
        %v512 = vpop.f32.mrb[0].mxu0
        %v513 = vadd.f32 0.0, %v512
        %v514 = vpop.f32.mrb[0].mxu0
        %v515 = vpop.f32.mrb[0].mxu0
        %v516 = vadd.f32 0.0, %v515
        %v517 = vpop.f32.mrb[0].mxu0
        %518 = vmatprep.mubr.bf16.mxu0 0
        %519 = vmatmul.mubr.bf16.gmra.mrb[0].mxu0 %v379
        %v520 = vpop.f32.mrb[0].mxu0
        %v521 = vadd.f32 0.0, %v520
        %v522 = vpop.f32.mrb[0].mxu0
        %v523 = vpop.f32.mrb[0].mxu0
        %v524 = vadd.f32 0.0, %v523
        %v525 = vpop.f32.mrb[0].mxu0
        %526 = vmatprep.mubr.bf16.mxu0 0
        %527 = vmatmul.mubr.bf16.gmra.mrb[0].mxu0 %v380
        %v528 = vpop.f32.mrb[0].mxu0
        %v529 = vadd.f32 0.0, %v528
        %v530 = vpop.f32.mrb[0].mxu0
        %v531 = vpop.f32.mrb[0].mxu0
        %v532 = vadd.f32 0.0, %v531
        %v533 = vpop.f32.mrb[0].mxu0
        %534 = vmatprep.mubr.bf16.mxu0 0
        %535 = vmatmul.mubr.bf16.gmra.mrb[0].mxu0 %v381
        %v536 = vpop.f32.mrb[0].mxu0
        %v537 = vadd.f32 0.0, %v536
        %v538 = vpop.f32.mrb[0].mxu0
        %v539 = vpop.f32.mrb[0].mxu0
        %v540 = vadd.f32 0.0, %v539
        %v541 = vpop.f32.mrb[0].mxu0
        %542 = vdwg.mxu0
        %v543 = vpack.c.bf16 %v484, %v481
        %v544 = vpack.c.bf16 %v492, %v489
        %v545 = vpack.c.bf16 %v500, %v497
        %v546 = vpack.c.bf16 %v508, %v505
        %v547 = vpack.c.bf16 %v516, %v513
        %v548 = vpack.c.bf16 %v524, %v521
        %v549 = vpack.c.bf16 %v532, %v529
        %v550 = vpack.c.bf16 %v540, %v537
        %v559 = vunpack.c.l.b16 %v543
        %v560 = vunpack.c.h.b16 %v543
        %v561 = vunpack.c.l.b16 %v544
        %v562 = vunpack.c.h.b16 %v544
        %v563 = vunpack.c.l.b16 %v545
        %v564 = vunpack.c.h.b16 %v545
        %v565 = vunpack.c.l.b16 %v546
        %v566 = vunpack.c.h.b16 %v546
        %v567 = vunpack.c.l.b16 %v547
        %v568 = vunpack.c.h.b16 %v547
        %v569 = vunpack.c.l.b16 %v548
        %v570 = vunpack.c.h.b16 %v548
        %v571 = vunpack.c.l.b16 %v549
        %v572 = vunpack.c.h.b16 %v549
        %v573 = vunpack.c.l.b16 %v550
        %v574 = vunpack.c.h.b16 %v550
        %v575 = vpack.c.b16 %v559, %v559
        %v576 = vpack.c.b16 %v560, %v560
        %v577 = vpack.c.b16 %v561, %v561
        %v578 = vpack.c.b16 %v562, %v562
        %v579 = vpack.c.b16 %v563, %v563
        %v580 = vpack.c.b16 %v564, %v564
        %v581 = vpack.c.b16 %v565, %v565
        %v582 = vpack.c.b16 %v566, %v566
        %v583 = vpack.c.b16 %v567, %v567
        %v584 = vpack.c.b16 %v568, %v568
        %v585 = vpack.c.b16 %v569, %v569
        %v586 = vpack.c.b16 %v570, %v570
        %v587 = vpack.c.b16 %v571, %v571
        %v588 = vpack.c.b16 %v572, %v572
        %v589 = vpack.c.b16 %v573, %v573
        %v590 = vpack.c.b16 %v574, %v574
        %607 = vst [vmem:[%s258] sm:$0xf] %v575
        %608 = vst [vmem:[%s258 + $0x4] sm:$0xf] %v576
        %609 = vst [vmem:[%s258 + $0x8] sm:$0xf] %v577
        %610 = vst [vmem:[%s258 + $0xc] sm:$0xf] %v578
        %611 = vst [vmem:[%s258 + $0x10] sm:$0xf] %v579
        %612 = vst [vmem:[%s258 + $0x14] sm:$0xf] %v580
        %613 = vst [vmem:[%s258 + $0x18] sm:$0xf] %v581
        %614 = vst [vmem:[%s258 + $0x1c] sm:$0xf] %v582
        %615 = vst [vmem:[%s258 + $0x20] sm:$0xf] %v583
        %616 = vst [vmem:[%s258 + $0x24] sm:$0xf] %v584
        %617 = vst [vmem:[%s258 + $0x28] sm:$0xf] %v585
        %618 = vst [vmem:[%s258 + $0x2c] sm:$0xf] %v586
        %619 = vst [vmem:[%s258 + $0x30] sm:$0xf] %v587
        %620 = vst [vmem:[%s258 + $0x34] sm:$0xf] %v588
        %621 = vst [vmem:[%s258 + $0x38] sm:$0xf] %v589
        %622 = vst [vmem:[%s258 + $0x3c] sm:$0xf] %v590
        %s623 = sand.u32 %s142, 1
        %s624 = scalar_lea.sflag [#allocation5], %s623
        %s625 = sand.u32 %s142, 1
        %s626 = smul.addr %s625, 64
        %s627 = scalar_lea.vmem [#allocation8], %s626
        // Predicated region
        $region49: #{tpu_custom_call.1} parent=39 // pred_check
          %p628 = pneg %p152
        $region50: #{tpu_custom_call.1} parent=39 // pred_check_branch
          %630 = sbr.rel (%p628) target = $region52
        $region51: #{tpu_custom_call.1} parent=39 // pred_region
          %s631 = smul.u32 16, %s24
          %s633 = ssub.s32 1024, 1024
          %634 = vsyncadd %s624, %s633
          %s635 = smul.addr %s631, 64
          %s636 = scalar_lea.hbm %s5, %s635
          %s637 = sshll.u32 %s627, 4
          %s638 = int_to_ptr.vmem [resolvable:$true] %s637
          %643 = dma.vmem_to_hbm [thread:$0]  %s638, 1024, %s636, %s624, 64, 64, 4
        $region52: #{tpu_custom_call.1} parent=39 // pred_fallthru
          _
      $region40: #{tpu_custom_call.1} parent=5 // pred_fallthru
        _
      %p644 = scmp.le.s32.totalorder 2, %s19
      // Predicated region
      $region53: #{tpu_custom_call.1} parent=5 // pred_check
        %p645 = pneg %p644
      $region54: #{tpu_custom_call.1} parent=5 // pred_check_branch
        %647 = sbr.rel (%p645) target = $region56
      $region55: #{tpu_custom_call.1} parent=5 // pred_region
        %s648 = ssub.s32 %s19, 2
        // Predicated region
        $region57: #{tpu_custom_call.1} parent=55 // pred_check
          %p649 = pneg %p158
        $region58: #{tpu_custom_call.1} parent=55 // pred_check_branch
          %651 = sbr.rel (%p649) target = $region60
        $region59: #{tpu_custom_call.1} parent=55 // pred_region
          %s652 = sand.u32 %s143, 1
          %s653 = scalar_lea.sflag [#allocation5], %s652
          %s654 = sand.u32 %s143, 1
          %s655 = smul.addr %s654, 64
          %s656 = scalar_lea.vmem [#allocation8], %s655
          %657 = dma.done %s653, 1024
        $region60: #{tpu_custom_call.1} parent=55 // pred_fallthru
          _
      $region56: #{tpu_custom_call.1} parent=5 // pred_fallthru
        _
    $region6: #{tpu_custom_call.1} parent=1 // loop_footer
      %s23 = sadd.s32 1, %s19
    $region7: #{tpu_custom_call.1} parent=1 // loop_footer_branch
      %18 = sbr.rel target = $region3
    $region8: #{tpu_custom_call.1} parent=1 // loop_exit
      _
    %658 = vsyncpa [#allocation4], 1
    %s659 = scalar_lea.sflag [#allocation4], 1
    %660 = vsyncpa %s659, 1
    %661 = vsyncpa [#allocation7], 1
    %662 = vsyncpa [#allocation5], 1
    %s663 = scalar_lea.sflag [#allocation5], 1
    %664 = vsyncpa %s663, 1

</llo_original>
